<compile_context>
chip_gen: v6e
topology: v6e:2x2x1
jax: 0.10.0
libtpu: 0.0.40
codegen_flags: <defaults>
</compile_context>

<pallas_src>
import math

import jax
import jax.numpy as jnp
from jax import lax
from jax.experimental import pallas as pl
from jax.experimental.pallas import tpu as pltpu

_LANE = 128
_MIB = 1024 * 1024
_MXU_DTYPES = (jnp.dtype(jnp.float32), jnp.dtype(jnp.bfloat16), jnp.dtype(jnp.float16))


def _round_up(x, m):
    return ((x + m - 1) // m) * m


def _round_down(x, m):
    return (x // m) * m


def _vmem_capacity_bytes():
    try:
        cap = getattr(pltpu.get_tpu_info(), "vmem_capacity_bytes", None)
        if cap:
            return int(cap)
    except Exception:
        pass
    return 64 * _MIB  # conservative fallback (v7x-class: 64 MiB / TensorCore)


def _sublane_rows(dtype):
    # Rows per 32-bit (8,128) VMEM tile; sub-32-bit dtypes pack along sublanes.
    return 8 * max(1, 4 // jnp.dtype(dtype).itemsize)


def _padded_tile_bytes(rows, cols, dtype):
    d = jnp.dtype(dtype)
    return (_round_up(max(int(rows), 1), _sublane_rows(d))
            * _round_up(max(int(cols), 1), _LANE) * d.itemsize)


def _vmem_need_bytes(tk, tn, basis_dtype, bank_dtype, out_dtype, use_vpu, multi_k):
    """Padded VMEM footprint of one pipelined grid step (double-buffered I/O)."""
    need = 2 * _padded_tile_bytes(tk, tn, basis_dtype)            # basis stream (x2 bufs)
    if use_vpu:
        need += 2 * _padded_tile_bytes(tk, 1, bank_dtype)         # bank column (x2 bufs)
        need += 2 * _padded_tile_bytes(tk, tn, jnp.float32)       # cast + product temps
    else:
        need += 2 * _padded_tile_bytes(1, tk, bank_dtype)         # bank row (x2 bufs)
    need += 2 * _padded_tile_bytes(1, tn, out_dtype)              # output (x2 bufs)
    if multi_k:
        need += _padded_tile_bytes(1, tn, jnp.float32)            # f32 accumulator
    return need


def _select_contraction(contraction, basis_dtype, vmem_capacity):
    if contraction in ("mxu", "vpu"):
        return contraction
    assert contraction == "auto", contraction
    if basis_dtype not in _MXU_DTYPES:
        return "vpu"          # value-exact f32 upcast; MXU fast path needs a float dtype
    if vmem_capacity <= 96 * _MIB:
        # 64 MiB/TC part (v7x-class): ~3.2 TB/s HBM outruns the M=1 MXU
        # weight-load rate, so contract on the VPU instead.
        return "vpu"
    # 128 MiB parts (v5e/v6e): the M=1 MXU GEMV is HBM-bound for f32 and at
    # rough parity for bf16; keep the MXU (no large f32 temps in VMEM).
    # TODO: re-check v6e bf16 against a bundle dump; flip to "vpu" if the MXU
    # weight-push cadence (not DMA) is the binding unit.
    return "mxu"


def _balance_lane_tiles(n, tn):
    """Best effort: keep the lane-tile count even (and >= 4) by shrinking tn so
    a dual-TC chip splits the 'parallel' N axis evenly.  Only shrinks tn."""
    n_tiles = pl.cdiv(n, tn)
    if n_tiles <= 1:
        return tn
    if n_tiles >= 4 and n_tiles % 2 == 0:
        return tn
    target = max(4, n_tiles + (n_tiles % 2))
    for cand in (target, target + 2, target + 4):
        t = max(_LANE, _round_up(pl.cdiv(n, cand), _LANE))
        if t <= tn and pl.cdiv(n, t) % 2 == 0:
            return t
    return tn


def _make_kernel(*, use_vpu, multi_k, tk, k_tiles, dof, out_dtype):
    valid_last = dof - (k_tiles - 1) * tk        # valid rows in the last K tile
    ragged = bool(multi_k) and valid_last != tk

    def partial(bank_tile, basis_tile, valid_rows):
        w = basis_tile
        if valid_rows is not None:
            # Ragged last K tile: zero the rows past dof (the DMA of the
            # partial block leaves them unspecified; the bank rows past dof are
            # deterministic zeros from the tiny host-side bank pad).
            rows = lax.broadcasted_iota(jnp.int32, w.shape, 0)
            w = jnp.where(rows < valid_rows, w, jnp.zeros_like(w))
        if use_vpu:
            # VPU/XLU contraction: lane-broadcast the bank column, multiply,
            # reduce over the K (sublane) axis in f32.  Avoids the M=1 MXU
            # weight-load bottleneck and never downcasts the bank.
            return jnp.sum(w.astype(jnp.float32) * bank_tile.astype(jnp.float32),
                           axis=0, keepdims=True)
        return jnp.dot(bank_tile, w, preferred_element_type=jnp.float32)

    if not multi_k:
        # Common case: whole bank resident, one K step -> direct store, no
        # accumulator scratch, no init/+= passes.
        def kernel(bank_ref, basis_ref, out_ref):
            out_ref[...] = partial(bank_ref[...], basis_ref[...], None).astype(out_dtype)
        return kernel

    def kernel(bank_ref, basis_ref, out_ref, acc_ref):
        k = pl.program_id(1)
        last = pl.num_programs(1) - 1

        @pl.when(k == 0)
        def _init():
            acc_ref[...] = jnp.zeros_like(acc_ref)

        if ragged:
            @pl.when(k != last)
            def _body():
                acc_ref[...] += partial(bank_ref[...], basis_ref[...], None)

            @pl.when(k == last)
            def _tail():
                acc_ref[...] += partial(bank_ref[...], basis_ref[...], valid_last)
        else:
            acc_ref[...] += partial(bank_ref[...], basis_ref[...], None)

        @pl.when(k == last)
        def _store():
            # (1, tn) lane-dense store; output traffic is ~1/dof of the basis
            # stream, so the sublane-1 masked store is immaterial.
            out_ref[...] = acc_ref[...].astype(out_dtype)

    return kernel


def structured_dense_forward(bank, basis, shape, *, contraction="auto",
                             tn=None, tk=None, out_dtype=None):
    """Pallas implementation of StructuredDenseParameter.forward().

    bank:  trainable parameter bank (dof == bank.size, flattened)
    basis: (dof, prod(shape)) fixed linear `transform`
    shape: output dense tensor shape
    contraction: 'auto' | 'mxu' | 'vpu'
    """
    shape = tuple(int(s) for s in shape)
    n = math.prod(shape)
    bank_flat = jnp.ravel(bank)
    dof = int(bank_flat.shape[0])
    assert basis.shape == (dof, n), (basis.shape, (dof, n))

    basis_dtype = jnp.dtype(basis.dtype)
    bank_dtype = jnp.dtype(bank_flat.dtype)
    out_dtype = jnp.dtype(bank_dtype if out_dtype is None else out_dtype)

    cap = _vmem_capacity_bytes()
    use_vpu = _select_contraction(contraction, basis_dtype, cap) == "vpu"
    if not use_vpu and basis_dtype not in _MXU_DTYPES:
        raise ValueError(
            "contraction='mxu' needs a float32/bfloat16/float16 basis; "
            "use contraction='vpu' for basis dtype %s" % basis_dtype)

    # MXU fast path feeds both operands in the basis dtype (documented
    # precision decision: an f32 bank is rounded to bf16 when the basis is
    # bf16).  The VPU path keeps the bank at full precision.
    bank_feed = bank_flat if use_vpu else bank_flat.astype(basis_dtype)
    bank_feed_dtype = jnp.dtype(bank_feed.dtype)

    basis_item = basis_dtype.itemsize
    out_item = out_dtype.itemsize

    # ---- VMEM-budget-derived tiling (mem-bound on the basis stream) ----------
    # Single margin: 20% physical headroom + a fixed compiler-scratch reserve;
    # footprints counted with (8,128)/sublane padding.
    budget = int(cap * 0.8) - 2 * _MIB
    tile_cap_bytes = 28 * _MIB           # per basis DMA tile (bounds fill/drain)
    n_lane_cap = _LANE if n < _LANE else _round_up(n, _LANE)

    def max_tn(tk_, multi_k_):
        """Largest lane tile (multiple of 128) fitting budget and tile cap."""
        rtk = _round_up(tk_, _sublane_rows(basis_dtype))
        hi = min(n_lane_cap,
                 max(_LANE, _round_down(tile_cap_bytes // (rtk * basis_item), _LANE)))
        if _vmem_need_bytes(tk_, _LANE, basis_dtype, bank_feed_dtype, out_dtype,
                            use_vpu, multi_k_) > budget:
            return 0
        lo_b, hi_b = 1, hi // _LANE
        while lo_b < hi_b:
            mid = (lo_b + hi_b + 1) // 2
            if _vmem_need_bytes(tk_, mid * _LANE, basis_dtype, bank_feed_dtype,
                                out_dtype, use_vpu, multi_k_) <= budget:
                lo_b = mid
            else:
                hi_b = mid - 1
        return lo_b * _LANE

    if tk is None:
        # Keep the whole bank (K) resident unless that squeezes the lane tile
        # below ~512; if so, tile K on the grid instead of shrinking tn.
        if max_tn(dof, False) >= min(512, n_lane_cap):
            tk = dof
        else:
            tn_target = min(2048, n_lane_cap, max(max_tn(_LANE, True), _LANE))
            lo_b, hi_b = 1, _round_up(dof, _LANE) // _LANE
            while lo_b < hi_b:
                mid = (lo_b + hi_b + 1) // 2
                if max_tn(mid * _LANE, True) >= tn_target:
                    lo_b = mid
                else:
                    hi_b = mid - 1
            tk = lo_b * _LANE
    tk = min(int(tk), dof)
    multi_k = tk < dof

    if tn is None:
        tn_auto = max_tn(tk, multi_k)
        assert tn_auto >= _LANE, "VMEM budget too small for the chosen K tile"
        tn = n if n < _LANE else min(tn_auto, n_lane_cap)
        if dof * n * basis_item >= 8 * _MIB:
            tn = _balance_lane_tiles(n, tn)   # dual-TC (v7x) balance on big streams
    tn = int(tn)

    n_tiles = pl.cdiv(n, tn)
    k_tiles = pl.cdiv(dof, tk) if multi_k else 1
    dof_pad = k_tiles * tk if multi_k else dof

    # Pad ONLY the tiny bank so its K blocks are in-bounds and deterministically
    # zero past dof.  The big basis is never copied/padded: the ragged last K
    # tile is masked in-kernel instead (saves up to ~3x HBM traffic vs padding).
    if use_vpu:
        bank2d = bank_feed.reshape(dof, 1)
        if dof_pad != dof:
            bank2d = jnp.pad(bank2d, ((0, dof_pad - dof), (0, 0)))
        bank_block = (tk, 1)
        bank_map = (lambda j, k: (k, 0)) if multi_k else (lambda j: (0, 0))
    else:
        bank2d = bank_feed.reshape(1, dof)
        if dof_pad != dof:
            bank2d = jnp.pad(bank2d, ((0, 0), (0, dof_pad - dof)))
        bank_block = (1, tk)
        bank_map = (lambda j, k: (0, k)) if multi_k else (lambda j: (0, 0))

    if multi_k:
        grid = (n_tiles, k_tiles)                     # reduction axis last
        basis_map = lambda j, k: (k, j)
        out_map = lambda j, k: (0, j)
        scratch = [pltpu.VMEM((1, tn), jnp.float32)]
        dims = ("parallel", "arbitrary")
    else:
        grid = (n_tiles,)
        basis_map = lambda j: (0, j)
        out_map = lambda j: (0, j)
        scratch = []
        dims = ("parallel",)

    need = _vmem_need_bytes(tk, tn, basis_dtype, bank_feed_dtype, out_dtype,
                            use_vpu, multi_k)
    vmem_limit = int(min(cap - 2 * _MIB,
                         max(int(cap * 0.8), int(need * 1.1) + 2 * _MIB)))

    cost = pl.CostEstimate(
        flops=2 * dof * n,
        transcendentals=0,
        bytes_accessed=(dof * n * basis_item + n * out_item
                        + int(bank2d.size) * bank_feed_dtype.itemsize),
    )

    kernel = _make_kernel(use_vpu=use_vpu, multi_k=multi_k, tk=tk,
                          k_tiles=k_tiles, dof=dof, out_dtype=out_dtype)

    dense_flat = pl.pallas_call(
        kernel,
        out_shape=jax.ShapeDtypeStruct((1, n), out_dtype),
        grid_spec=pltpu.PrefetchScalarGridSpec(
            num_scalar_prefetch=0,
            grid=grid,
            in_specs=[
                pl.BlockSpec(bank_block, bank_map),    # tiny bank (resident)
                pl.BlockSpec((tk, tn), basis_map),     # big basis tile stream
            ],
            out_specs=pl.BlockSpec((1, tn), out_map),
            scratch_shapes=scratch,
        ),
        compiler_params=pltpu.CompilerParams(
            dimension_semantics=dims,
            vmem_limit_bytes=vmem_limit,
        ),
        cost_estimate=cost,
    )(bank2d, basis)

    dense = dense_flat.reshape(shape)
    # mirrors the module's assert in forward()
    assert dense.shape == shape, (
        "reparameterized dense tensor shape {} does not match specified shape {}"
        .format(dense.shape, shape))
    return dense


# TODO(synk): init_params() raises NotImplementedError in the base class; no
# Pallas equivalent is needed (demo parameters are initialized below).


if __name__ == "__main__":
    key = jax.random.PRNGKey(0)

    def make_problem(k, shape, dof):
        n = math.prod(shape)
        k1, k2 = jax.random.split(k)
        bank = jax.random.normal(k1, (dof,), dtype=jnp.float32)
        basis = jax.random.normal(k2, (dof, n), dtype=jnp.float32) / math.sqrt(dof)
        return bank, basis

    def ref_forward(bank, basis_f32, shape):
        flat = jnp.dot(bank.reshape(1, -1), basis_f32,
                       precision=lax.Precision.HIGHEST)
        return flat.reshape(shape)

    # 1) canonical small case: dense (8, 128), dof = 64 -> single grid step.
    shape1 = (8, 128)
    bank1, basis1 = make_problem(jax.random.fold_in(key, 1), shape1, 64)
    out1 = jax.block_until_ready(structured_dense_forward(bank1, basis1, shape1))
    ref1 = ref_forward(bank1, basis1, shape1)
    assert out1.shape == shape1
    assert jnp.allclose(out1, ref1, atol=2e-3, rtol=2e-3)

    # 2) bf16 basis stream (halves HBM traffic of the bandwidth-bound read).
    basis1_bf16 = basis1.astype(jnp.bfloat16)
    out2 = jax.block_until_ready(structured_dense_forward(bank1, basis1_bf16, shape1))
    ref2 = ref_forward(bank1, basis1_bf16.astype(jnp.float32), shape1)
    assert jnp.allclose(out2, ref2, atol=2e-2, rtol=2e-2)

    # 3) element count not a multiple of 128 -> masked partial lane tile.
    shape3 = (5, 100)
    bank3, basis3 = make_problem(jax.random.fold_in(key, 3), shape3, 48)
    out3 = jax.block_until_ready(structured_dense_forward(bank3, basis3, shape3))
    ref3 = ref_forward(bank3, basis3, shape3)
    assert jnp.allclose(out3, ref3, atol=2e-3, rtol=2e-3)

    # 4) forced K-tiled *ragged* dof (dof=200, tk=128): in-kernel masking of the
    #    last K tile, no host-side basis pad.
    shape4 = (8, 128)
    bank4, basis4 = make_problem(jax.random.fold_in(key, 4), shape4, 200)
    out4 = jax.block_until_ready(
        structured_dense_forward(bank4, basis4, shape4, tk=128))
    ref4 = ref_forward(bank4, basis4, shape4)
    assert jnp.allclose(out4, ref4, atol=2e-3, rtol=2e-3)

    # 5) forced VPU contraction, single K step.
    out5 = jax.block_until_ready(
        structured_dense_forward(bank1, basis1, shape1, contraction="vpu"))
    assert jnp.allclose(out5, ref1, atol=2e-3, rtol=2e-3)

    # 6) forced VPU contraction, K-tiled ragged dof.
    out6 = jax.block_until_ready(
        structured_dense_forward(bank4, basis4, shape4, tk=128, contraction="vpu"))
    assert jnp.allclose(out6, ref4, atol=2e-3, rtol=2e-3)

    # 7) forced MXU contraction (also exercised on chips where auto picks VPU).
    out7 = jax.block_until_ready(
        structured_dense_forward(bank4, basis4, shape4, tk=128, contraction="mxu"))
    assert jnp.allclose(out7, ref4, atol=2e-3, rtol=2e-3)

    print("KERNEL_OK")
</pallas_src>

<mosaic_0001>
module attributes {stable_mosaic.version = 11 : i64} {
  func.func @kernel(%arg0: i32, %arg1: memref<64x1xf32, #tpu.memory_space<vmem>>, %arg2: memref<64x1024xf32, #tpu.memory_space<vmem>>, %arg3: memref<1x1024xf32, #tpu.memory_space<vmem>>) attributes {dimension_semantics = [#tpu.dimension_semantics<parallel>], iteration_bounds = array<i64: 1>, scalar_prefetch = 0 : i64, scratch_operands = 0 : i64, tpu.core_type = #tpu.core_type<tc>, window_params = [{pipeline_mode = #tpu.pipeline_mode<synchronous>, transform_indices = @transform_0, window_bounds = array<i64: 64, 1>}, {transform_indices = @transform_1, window_bounds = array<i64: 64, 1024>}, {transform_indices = @transform_2, window_bounds = array<i64: 1, 1024>}]} {
    %c0 = arith.constant 0 : index
    %c0_0 = arith.constant 0 : index
    %0 = vector.load %arg1[%c0, %c0_0] : memref<64x1xf32, #tpu.memory_space<vmem>>, vector<64x1xf32>
    %c0_1 = arith.constant 0 : index
    %c0_2 = arith.constant 0 : index
    %1 = vector.load %arg2[%c0_1, %c0_2] : memref<64x1024xf32, #tpu.memory_space<vmem>>, vector<64x1024xf32>
    %2 = vector.broadcast %0 : vector<64x1xf32> to vector<64x1024xf32>
    %3 = arith.mulf %1, %2 : vector<64x1024xf32>
    %cst = arith.constant dense<0.000000e+00> : vector<1024xf32>
    %4 = vector.multi_reduction <add>, %3, %cst [0] : vector<64x1024xf32> to vector<1024xf32>
    %5 = vector.shape_cast %4 : vector<1024xf32> to vector<1x1024xf32>
    %c0_3 = arith.constant 0 : index
    %c0_4 = arith.constant 0 : index
    %6 = vector.load %arg3[%c0_3, %c0_4] : memref<1x1024xf32, #tpu.memory_space<vmem>>, vector<1x1024xf32>
    tpu.vector_store %arg3[%c0_3, %c0_4], %5 {strides = array<i32>} : memref<1x1024xf32, #tpu.memory_space<vmem>>, vector<1x1024xf32>,
    return
  }
  func.func @transform_0(%arg0: i32) -> (i32, i32) {
    %c0_i32 = arith.constant 0 : i32
    %c0_i32_0 = arith.constant 0 : i32
    %c0_i32_1 = arith.constant 0 : i32
    return %c0_i32, %c0_i32_0 : i32, i32
  }
  func.func @transform_1(%arg0: i32) -> (i32, i32) {
    %c0_i32 = arith.constant 0 : i32
    %c0_i32_0 = arith.constant 0 : i32
    return %c0_i32, %arg0 : i32, i32
  }
  func.func @transform_2(%arg0: i32) -> (i32, i32) {
    %c0_i32 = arith.constant 0 : i32
    %c0_i32_0 = arith.constant 0 : i32
    return %c0_i32, %arg0 : i32, i32
  }
}

</mosaic_0001>

<llo_original>
// kernel: tpu_custom_call.1
$region0: #{tpu_custom_call.1}
  #allocation0 [shape = 'u32[]', space=smem, size = 0x4, offset = 0x4, fixed_abs, tag = 'smem constant byte address 0x4 - core index']
  #allocation1 [shape = 'u32[144,128]{1,0:T(1,128)}', space=vmem, size = 0x12000, scoped, tag = 'internal scratch']
  %s0 = inlined_call_operand.vmem [shape: f32[64,1], index: 0, kind: input, shape index: {}]
  %s1 = inlined_call_operand.hbm [shape: f32[64,1024], index: 1, kind: input, shape index: {}]
  %s2 = inlined_call_operand.hbm [shape: f32[1,1024], index: 2, kind: output, shape index: {}]
  %s3 = sld [smem:[#allocation0]]
  $region22: #{tpu_custom_call.1} parent=0
    _
  %s5 = ssub.s32 1, %s3
  %s6 = scalar_select 0, %s5, %s3
  $region1: #{tpu_custom_call.1} parent=0
    #allocation2 [shape = 'u8[262144]{0}', space=vmem, size = 0x40000, scoped, tag = 'input window, operand 1, single buffered']
    #allocation3 [shape = 's32[1]{0}', space=sflag, size = 0x4, scoped, tag = 'scoped memory for tpu_custom_call.1']
    #allocation4 [shape = 's32[1]{0}', space=sflag, size = 0x4, scoped, tag = 'scoped memory for tpu_custom_call.1']
    #allocation5 [shape = 'u8[4096]{0}', space=vmem, size = 0x1000, scoped, tag = 'output window, operand 0, single buffered']
    %7 = vsyncpa [#allocation3], 0
    %8 = vsyncpa [#allocation4], 0
    // Predicated region
    $region2: #{tpu_custom_call.1} parent=1 // pred_check
      _
    $region3: #{tpu_custom_call.1} parent=1 // pred_check_branch
      %10 = sbr.rel (0) target = $region5
    $region4: #{tpu_custom_call.1} parent=1 // pred_region
      _
    $region5: #{tpu_custom_call.1} parent=1 // pred_fallthru
      _
    // Predicated region
    $region6: #{tpu_custom_call.1} parent=1 // pred_check
      _
    $region7: #{tpu_custom_call.1} parent=1 // pred_check_branch
      %12 = sbr.rel (0) target = $region9
    $region8: #{tpu_custom_call.1} parent=1 // pred_region
      %s14 = ssub.s32 8192, 8192
      %15 = vsyncadd [#allocation3], %s14
      %s16 = sshll.u32 [#allocation2], 4
      %s17 = int_to_ptr.vmem [resolvable:$true] %s16
      %22 = dma.hbm_to_vmem [thread:$0]  %s1, 8192, %s17, [#allocation3], 1024, 1024, 64
    $region9: #{tpu_custom_call.1} parent=1 // pred_fallthru
      _
    // Predicated region
    $region10: #{tpu_custom_call.1} parent=1 // pred_check
      _
    $region11: #{tpu_custom_call.1} parent=1 // pred_check_branch
      %24 = sbr.rel (0) target = $region13
    $region12: #{tpu_custom_call.1} parent=1 // pred_region
      %25 = dma.done [#allocation3], 8192
    $region13: #{tpu_custom_call.1} parent=1 // pred_fallthru
      _
    %v26 = vld [vmem:[%s0] sm:$0xff]
    %v27 = vld [vmem:[%s0 + $0x8] sm:$0xff]
    %v28 = vld [vmem:[%s0 + $0x10] sm:$0xff]
    %v29 = vld [vmem:[%s0 + $0x18] sm:$0xff]
    %v30 = vld [vmem:[%s0 + $0x20] sm:$0xff]
    %v31 = vld [vmem:[%s0 + $0x28] sm:$0xff]
    %v32 = vld [vmem:[%s0 + $0x30] sm:$0xff]
    %v33 = vld [vmem:[%s0 + $0x38] sm:$0xff]
    %v34 = vld [vmem:[#allocation2] sm:$0xff]
    %v35 = vld [vmem:[#allocation2 + $0x8] sm:$0xff]
    %v36 = vld [vmem:[#allocation2 + $0x10] sm:$0xff]
    %v37 = vld [vmem:[#allocation2 + $0x18] sm:$0xff]
    %v38 = vld [vmem:[#allocation2 + $0x20] sm:$0xff]
    %v39 = vld [vmem:[#allocation2 + $0x28] sm:$0xff]
    %v40 = vld [vmem:[#allocation2 + $0x30] sm:$0xff]
    %v41 = vld [vmem:[#allocation2 + $0x38] sm:$0xff]
    %v42 = vld [vmem:[#allocation2 + $0x40] sm:$0xff]
    %v43 = vld [vmem:[#allocation2 + $0x48] sm:$0xff]
    %v44 = vld [vmem:[#allocation2 + $0x50] sm:$0xff]
    %v45 = vld [vmem:[#allocation2 + $0x58] sm:$0xff]
    %v46 = vld [vmem:[#allocation2 + $0x60] sm:$0xff]
    %v47 = vld [vmem:[#allocation2 + $0x68] sm:$0xff]
    %v48 = vld [vmem:[#allocation2 + $0x70] sm:$0xff]
    %v49 = vld [vmem:[#allocation2 + $0x78] sm:$0xff]
    %v50 = vld [vmem:[#allocation2 + $0x80] sm:$0xff]
    %v51 = vld [vmem:[#allocation2 + $0x88] sm:$0xff]
    %v52 = vld [vmem:[#allocation2 + $0x90] sm:$0xff]
    %v53 = vld [vmem:[#allocation2 + $0x98] sm:$0xff]
    %v54 = vld [vmem:[#allocation2 + $0xa0] sm:$0xff]
    %v55 = vld [vmem:[#allocation2 + $0xa8] sm:$0xff]
    %v56 = vld [vmem:[#allocation2 + $0xb0] sm:$0xff]
    %v57 = vld [vmem:[#allocation2 + $0xb8] sm:$0xff]
    %v58 = vld [vmem:[#allocation2 + $0xc0] sm:$0xff]
    %v59 = vld [vmem:[#allocation2 + $0xc8] sm:$0xff]
    %v60 = vld [vmem:[#allocation2 + $0xd0] sm:$0xff]
    %v61 = vld [vmem:[#allocation2 + $0xd8] sm:$0xff]
    %v62 = vld [vmem:[#allocation2 + $0xe0] sm:$0xff]
    %v63 = vld [vmem:[#allocation2 + $0xe8] sm:$0xff]
    %v64 = vld [vmem:[#allocation2 + $0xf0] sm:$0xff]
    %v65 = vld [vmem:[#allocation2 + $0xf8] sm:$0xff]
    %v66 = vld [vmem:[#allocation2 + $0x100] sm:$0xff]
    %v67 = vld [vmem:[#allocation2 + $0x108] sm:$0xff]
    %v68 = vld [vmem:[#allocation2 + $0x110] sm:$0xff]
    %v69 = vld [vmem:[#allocation2 + $0x118] sm:$0xff]
    %v70 = vld [vmem:[#allocation2 + $0x120] sm:$0xff]
    %v71 = vld [vmem:[#allocation2 + $0x128] sm:$0xff]
    %v72 = vld [vmem:[#allocation2 + $0x130] sm:$0xff]
    %v73 = vld [vmem:[#allocation2 + $0x138] sm:$0xff]
    %v74 = vld [vmem:[#allocation2 + $0x140] sm:$0xff]
    %v75 = vld [vmem:[#allocation2 + $0x148] sm:$0xff]
    %v76 = vld [vmem:[#allocation2 + $0x150] sm:$0xff]
    %v77 = vld [vmem:[#allocation2 + $0x158] sm:$0xff]
    %v78 = vld [vmem:[#allocation2 + $0x160] sm:$0xff]
    %v79 = vld [vmem:[#allocation2 + $0x168] sm:$0xff]
    %v80 = vld [vmem:[#allocation2 + $0x170] sm:$0xff]
    %v81 = vld [vmem:[#allocation2 + $0x178] sm:$0xff]
    %v82 = vld [vmem:[#allocation2 + $0x180] sm:$0xff]
    %v83 = vld [vmem:[#allocation2 + $0x188] sm:$0xff]
    %v84 = vld [vmem:[#allocation2 + $0x190] sm:$0xff]
    %v85 = vld [vmem:[#allocation2 + $0x198] sm:$0xff]
    %v86 = vld [vmem:[#allocation2 + $0x1a0] sm:$0xff]
    %v87 = vld [vmem:[#allocation2 + $0x1a8] sm:$0xff]
    %v88 = vld [vmem:[#allocation2 + $0x1b0] sm:$0xff]
    %v89 = vld [vmem:[#allocation2 + $0x1b8] sm:$0xff]
    %v90 = vld [vmem:[#allocation2 + $0x1c0] sm:$0xff]
    %v91 = vld [vmem:[#allocation2 + $0x1c8] sm:$0xff]
    %v92 = vld [vmem:[#allocation2 + $0x1d0] sm:$0xff]
    %v93 = vld [vmem:[#allocation2 + $0x1d8] sm:$0xff]
    %v94 = vld [vmem:[#allocation2 + $0x1e0] sm:$0xff]
    %v95 = vld [vmem:[#allocation2 + $0x1e8] sm:$0xff]
    %v96 = vld [vmem:[#allocation2 + $0x1f0] sm:$0xff]
    %v97 = vld [vmem:[#allocation2 + $0x1f8] sm:$0xff]
    %99 = vset.pattern.permute.xlu0 0
    %100 = vperm.xlu0 %99, %v26
    %v101 = vpop.permute.xlu0 %100
    %104 = vset.pattern.permute.xlu0 0
    %105 = vperm.xlu0 %104, %v27
    %v106 = vpop.permute.xlu0 %105
    %109 = vset.pattern.permute.xlu0 0
    %110 = vperm.xlu0 %109, %v28
    %v111 = vpop.permute.xlu0 %110
    %114 = vset.pattern.permute.xlu0 0
    %115 = vperm.xlu0 %114, %v29
    %v116 = vpop.permute.xlu0 %115
    %119 = vset.pattern.permute.xlu0 0
    %120 = vperm.xlu0 %119, %v30
    %v121 = vpop.permute.xlu0 %120
    %124 = vset.pattern.permute.xlu0 0
    %125 = vperm.xlu0 %124, %v31
    %v126 = vpop.permute.xlu0 %125
    %129 = vset.pattern.permute.xlu0 0
    %130 = vperm.xlu0 %129, %v32
    %v131 = vpop.permute.xlu0 %130
    %134 = vset.pattern.permute.xlu0 0
    %135 = vperm.xlu0 %134, %v33
    %v136 = vpop.permute.xlu0 %135
    %v138 = vmul.f32 %v34, %v101
    %v139 = vmul.f32 %v35, %v101
    %v140 = vmul.f32 %v36, %v101
    %v141 = vmul.f32 %v37, %v101
    %v142 = vmul.f32 %v38, %v101
    %v143 = vmul.f32 %v39, %v101
    %v144 = vmul.f32 %v40, %v101
    %v145 = vmul.f32 %v41, %v101
    %v146 = vmul.f32 %v42, %v106
    %v147 = vmul.f32 %v43, %v106
    %v148 = vmul.f32 %v44, %v106
    %v149 = vmul.f32 %v45, %v106
    %v150 = vmul.f32 %v46, %v106
    %v151 = vmul.f32 %v47, %v106
    %v152 = vmul.f32 %v48, %v106
    %v153 = vmul.f32 %v49, %v106
    %v154 = vmul.f32 %v50, %v111
    %v155 = vmul.f32 %v51, %v111
    %v156 = vmul.f32 %v52, %v111
    %v157 = vmul.f32 %v53, %v111
    %v158 = vmul.f32 %v54, %v111
    %v159 = vmul.f32 %v55, %v111
    %v160 = vmul.f32 %v56, %v111
    %v161 = vmul.f32 %v57, %v111
    %v162 = vmul.f32 %v58, %v116
    %v163 = vmul.f32 %v59, %v116
    %v164 = vmul.f32 %v60, %v116
    %v165 = vmul.f32 %v61, %v116
    %v166 = vmul.f32 %v62, %v116
    %v167 = vmul.f32 %v63, %v116
    %v168 = vmul.f32 %v64, %v116
    %v169 = vmul.f32 %v65, %v116
    %v170 = vmul.f32 %v66, %v121
    %v171 = vmul.f32 %v67, %v121
    %v172 = vmul.f32 %v68, %v121
    %v173 = vmul.f32 %v69, %v121
    %v174 = vmul.f32 %v70, %v121
    %v175 = vmul.f32 %v71, %v121
    %v176 = vmul.f32 %v72, %v121
    %v177 = vmul.f32 %v73, %v121
    %v178 = vmul.f32 %v74, %v126
    %v179 = vmul.f32 %v75, %v126
    %v180 = vmul.f32 %v76, %v126
    %v181 = vmul.f32 %v77, %v126
    %v182 = vmul.f32 %v78, %v126
    %v183 = vmul.f32 %v79, %v126
    %v184 = vmul.f32 %v80, %v126
    %v185 = vmul.f32 %v81, %v126
    %v186 = vmul.f32 %v82, %v131
    %v187 = vmul.f32 %v83, %v131
    %v188 = vmul.f32 %v84, %v131
    %v189 = vmul.f32 %v85, %v131
    %v190 = vmul.f32 %v86, %v131
    %v191 = vmul.f32 %v87, %v131
    %v192 = vmul.f32 %v88, %v131
    %v193 = vmul.f32 %v89, %v131
    %v194 = vmul.f32 %v90, %v136
    %v195 = vmul.f32 %v91, %v136
    %v196 = vmul.f32 %v92, %v136
    %v197 = vmul.f32 %v93, %v136
    %v198 = vmul.f32 %v94, %v136
    %v199 = vmul.f32 %v95, %v136
    %v200 = vmul.f32 %v96, %v136
    %v201 = vmul.f32 %v97, %v136
    %v202 = vadd.f32 %v138, %v146
    %v203 = vadd.f32 %v202, %v154
    %v204 = vadd.f32 %v203, %v162
    %v205 = vadd.f32 %v204, %v170
    %v206 = vadd.f32 %v205, %v178
    %v207 = vadd.f32 %v206, %v186
    %v208 = vadd.f32 %v207, %v194
    %v209 = vrot.slane %v208, 4
    %v210 = vadd.f32 %v208, %v209
    %v211 = vrot.slane %v210, 2
    %v212 = vadd.f32 %v210, %v211
    %v213 = vrot.slane %v212, 1
    %v214 = vadd.f32 %v212, %v213
    %v215 = vadd.f32 %v139, %v147
    %v216 = vadd.f32 %v215, %v155
    %v217 = vadd.f32 %v216, %v163
    %v218 = vadd.f32 %v217, %v171
    %v219 = vadd.f32 %v218, %v179
    %v220 = vadd.f32 %v219, %v187
    %v221 = vadd.f32 %v220, %v195
    %v222 = vrot.slane %v221, 4
    %v223 = vadd.f32 %v221, %v222
    %v224 = vrot.slane %v223, 2
    %v225 = vadd.f32 %v223, %v224
    %v226 = vrot.slane %v225, 1
    %v227 = vadd.f32 %v225, %v226
    %v228 = vadd.f32 %v140, %v148
    %v229 = vadd.f32 %v228, %v156
    %v230 = vadd.f32 %v229, %v164
    %v231 = vadd.f32 %v230, %v172
    %v232 = vadd.f32 %v231, %v180
    %v233 = vadd.f32 %v232, %v188
    %v234 = vadd.f32 %v233, %v196
    %v235 = vrot.slane %v234, 4
    %v236 = vadd.f32 %v234, %v235
    %v237 = vrot.slane %v236, 2
    %v238 = vadd.f32 %v236, %v237
    %v239 = vrot.slane %v238, 1
    %v240 = vadd.f32 %v238, %v239
    %v241 = vadd.f32 %v141, %v149
    %v242 = vadd.f32 %v241, %v157
    %v243 = vadd.f32 %v242, %v165
    %v244 = vadd.f32 %v243, %v173
    %v245 = vadd.f32 %v244, %v181
    %v246 = vadd.f32 %v245, %v189
    %v247 = vadd.f32 %v246, %v197
    %v248 = vrot.slane %v247, 4
    %v249 = vadd.f32 %v247, %v248
    %v250 = vrot.slane %v249, 2
    %v251 = vadd.f32 %v249, %v250
    %v252 = vrot.slane %v251, 1
    %v253 = vadd.f32 %v251, %v252
    %v254 = vadd.f32 %v142, %v150
    %v255 = vadd.f32 %v254, %v158
    %v256 = vadd.f32 %v255, %v166
    %v257 = vadd.f32 %v256, %v174
    %v258 = vadd.f32 %v257, %v182
    %v259 = vadd.f32 %v258, %v190
    %v260 = vadd.f32 %v259, %v198
    %v261 = vrot.slane %v260, 4
    %v262 = vadd.f32 %v260, %v261
    %v263 = vrot.slane %v262, 2
    %v264 = vadd.f32 %v262, %v263
    %v265 = vrot.slane %v264, 1
    %v266 = vadd.f32 %v264, %v265
    %v267 = vadd.f32 %v143, %v151
    %v268 = vadd.f32 %v267, %v159
    %v269 = vadd.f32 %v268, %v167
    %v270 = vadd.f32 %v269, %v175
    %v271 = vadd.f32 %v270, %v183
    %v272 = vadd.f32 %v271, %v191
    %v273 = vadd.f32 %v272, %v199
    %v274 = vrot.slane %v273, 4
    %v275 = vadd.f32 %v273, %v274
    %v276 = vrot.slane %v275, 2
    %v277 = vadd.f32 %v275, %v276
    %v278 = vrot.slane %v277, 1
    %v279 = vadd.f32 %v277, %v278
    %v280 = vadd.f32 %v144, %v152
    %v281 = vadd.f32 %v280, %v160
    %v282 = vadd.f32 %v281, %v168
    %v283 = vadd.f32 %v282, %v176
    %v284 = vadd.f32 %v283, %v184
    %v285 = vadd.f32 %v284, %v192
    %v286 = vadd.f32 %v285, %v200
    %v287 = vrot.slane %v286, 4
    %v288 = vadd.f32 %v286, %v287
    %v289 = vrot.slane %v288, 2
    %v290 = vadd.f32 %v288, %v289
    %v291 = vrot.slane %v290, 1
    %v292 = vadd.f32 %v290, %v291
    %v293 = vadd.f32 %v145, %v153
    %v294 = vadd.f32 %v293, %v161
    %v295 = vadd.f32 %v294, %v169
    %v296 = vadd.f32 %v295, %v177
    %v297 = vadd.f32 %v296, %v185
    %v298 = vadd.f32 %v297, %v193
    %v299 = vadd.f32 %v298, %v201
    %v300 = vrot.slane %v299, 4
    %v301 = vadd.f32 %v299, %v300
    %v302 = vrot.slane %v301, 2
    %v303 = vadd.f32 %v301, %v302
    %v304 = vrot.slane %v303, 1
    %v305 = vadd.f32 %v303, %v304
    %v314 = vcombine.low %v214, %v227
    %v315 = vcombine.low %v240, %v253
    %v316 = vcombine.low %v266, %v279
    %v317 = vcombine.low %v292, %v305
    %v319 = vunpack.c.l.s4 1966171168
    %v320 = vunpack.c.0.s8 %v319
    %v321 = vlaneseq
    %v322 = vshrl.u32 %v321, 7
    %v323 = vsub.s32 %v320, %v322
    %v324 = vrot.slane %v314, %v323
    %v326 = vunpack.c.l.s4 1966171168
    %v327 = vunpack.c.0.s8 %v326
    %v328 = vlaneseq
    %v329 = vshrl.u32 %v328, 7
    %v330 = vsub.s32 %v327, %v329
    %v331 = vrot.slane %v315, %v330
    %v333 = vunpack.c.l.s4 1966171168
    %v334 = vunpack.c.0.s8 %v333
    %v335 = vlaneseq
    %v336 = vshrl.u32 %v335, 7
    %v337 = vsub.s32 %v334, %v336
    %v338 = vrot.slane %v316, %v337
    %v340 = vunpack.c.l.s4 1966171168
    %v341 = vunpack.c.0.s8 %v340
    %v342 = vlaneseq
    %v343 = vshrl.u32 %v342, 7
    %v344 = vsub.s32 %v341, %v343
    %v345 = vrot.slane %v317, %v344
    %v346 = vcombine.low %v324, %v331
    %v347 = vcombine.low %v338, %v345
    %v349 = vunpack.c.l.s4 1966171168
    %v350 = vunpack.c.0.s8 %v349
    %v351 = vlaneseq
    %v352 = vshrl.u32 %v351, 7
    %v353 = vsub.s32 %v350, %v352
    %v354 = vrot.slane %v346, %v353
    %v356 = vunpack.c.l.s4 1966171168
    %v357 = vunpack.c.0.s8 %v356
    %v358 = vlaneseq
    %v359 = vshrl.u32 %v358, 7
    %v360 = vsub.s32 %v357, %v359
    %v361 = vrot.slane %v347, %v360
    %v362 = vcombine.low %v354, %v361
    %364 = vst [vmem:[#allocation5] sm:$0xff] %v362
    // Predicated region
    $region14: #{tpu_custom_call.1} parent=1 // pred_check
      _
    $region15: #{tpu_custom_call.1} parent=1 // pred_check_branch
      %366 = sbr.rel (0) target = $region17
    $region16: #{tpu_custom_call.1} parent=1 // pred_region
      %s368 = ssub.s32 128, 128
      %369 = vsyncadd [#allocation4], %s368
      %s371 = sshll.u32 [#allocation5], 4
      %s372 = int_to_ptr.vmem [resolvable:$true] %s371
      %374 = dma.vmem_to_hbm [thread:$0]  %s372, 128, %s2, [#allocation4]
    $region17: #{tpu_custom_call.1} parent=1 // pred_fallthru
      _
    // Predicated region
    $region18: #{tpu_custom_call.1} parent=1 // pred_check
      _
    $region19: #{tpu_custom_call.1} parent=1 // pred_check_branch
      %376 = sbr.rel (0) target = $region21
    $region20: #{tpu_custom_call.1} parent=1 // pred_region
      %377 = dma.done [#allocation4], 128
    $region21: #{tpu_custom_call.1} parent=1 // pred_fallthru
      _
    %378 = vsyncpa [#allocation3], 1
    %379 = vsyncpa [#allocation4], 1

</llo_original>
